<compile_context>
chip_gen: v7x
topology: tpu7x:2x2x1
jax: 0.10.0
libtpu: 0.0.40
codegen_flags: <defaults>
</compile_context>

<pallas_src>
import numpy as np
import jax
import jax.numpy as jnp
from jax.experimental import pallas as pl
from jax.experimental.pallas import tpu as pltpu


def _round_up(x, m):
    return ((x + m - 1) // m) * m


def _softplus(x):
    # numerically stable softplus: max(x,0) + log1p(exp(-|x|)) (== jax.nn.softplus)
    return jnp.maximum(x, 0.0) + jnp.log1p(jnp.exp(-jnp.abs(x)))


# ----------------------------------------------------------------------------
# kernel
# ----------------------------------------------------------------------------

def actor_beta_kernel(s_ref, w1_ref, b1_ref, w2_ref, b2_ref, wh_ref, bh_ref, out_ref):
    """One batch tile: two tanh-MLP layers + fused (alpha|beta) head."""
    w_dtype = w1_ref.dtype                      # bf16 by default, f32 optional
    s = s_ref[...].astype(w_dtype)              # cast on load; MXU runs bf16-native
    # fc1 + tanh (accumulate f32; elementwise stays f32 -> v5e-safe)
    h = jnp.tanh(
        jnp.dot(s, w1_ref[...], preferred_element_type=jnp.float32) + b1_ref[...]
    )
    # fc2 + tanh
    h = jnp.tanh(
        jnp.dot(h.astype(w_dtype), w2_ref[...], preferred_element_type=jnp.float32)
        + b2_ref[...]
    )
    # fused alpha|beta head; output is the unpadded (TB, 2*A) slab
    z = (
        jnp.dot(h.astype(w_dtype), wh_ref[...], preferred_element_type=jnp.float32)
        + bh_ref[...]
    )
    out_ref[...] = _softplus(z) + 1.0


# ----------------------------------------------------------------------------
# parameter construction / preparation
# ----------------------------------------------------------------------------

def _orthogonal(rng, rows, cols, gain=1.0):
    """Deterministic orthogonal init matching nn.init.orthogonal_ semantics."""
    a = rng.standard_normal((max(rows, cols), min(rows, cols)))
    q, r = np.linalg.qr(a)
    q = q * np.sign(np.diag(r))
    if rows < cols:
        q = q.T
    return (gain * q[:rows, :cols]).astype(np.float32)


def make_params(state_dim, hidden_width, action_dim, seed=0):
    """Logical (unpadded) params; weights stored transposed as (in, out) for x @ W."""
    rng = np.random.default_rng(seed)
    w1 = _orthogonal(rng, hidden_width, state_dim, gain=1.0).T
    w2 = _orthogonal(rng, hidden_width, hidden_width, gain=1.0).T
    wa = _orthogonal(rng, action_dim, hidden_width, gain=0.01).T
    wb = _orthogonal(rng, action_dim, hidden_width, gain=0.01).T
    zeros = lambda n: np.zeros((1, n), np.float32)
    return {
        "w1": jnp.asarray(w1), "b1": jnp.asarray(zeros(hidden_width)),
        "w2": jnp.asarray(w2), "b2": jnp.asarray(zeros(hidden_width)),
        "wa": jnp.asarray(wa), "ba": jnp.asarray(zeros(action_dim)),
        "wb": jnp.asarray(wb), "bb": jnp.asarray(zeros(action_dim)),
    }


def prepare_params(params, matmul_dtype=jnp.bfloat16):
    """Fuse the alpha/beta heads and lane-pad only the hidden dim.

    * state_dim is NOT padded (the input block covers the full minor dim).
    * hidden is zero-padded to a multiple of 128 (exact: tanh(0)=0 feeds zero
      weights downstream).
    * the fused head keeps its real width 2*action_dim (unpadded output slab).
    * weights stored in `matmul_dtype` (bf16 default); biases stay f32 (added
      to the f32 accumulator).
    """
    w1, b1 = np.asarray(params["w1"], np.float32), np.asarray(params["b1"], np.float32)
    w2, b2 = np.asarray(params["w2"], np.float32), np.asarray(params["b2"], np.float32)
    wa, ba = np.asarray(params["wa"], np.float32), np.asarray(params["ba"], np.float32)
    wb, bb = np.asarray(params["wb"], np.float32), np.asarray(params["bb"], np.float32)

    S, H = w1.shape
    A = wa.shape[1]
    H_pad = _round_up(H, 128)
    A2 = 2 * A

    w1p = np.zeros((S, H_pad), np.float32);     w1p[:, :H] = w1
    b1p = np.zeros((1, H_pad), np.float32);     b1p[:, :H] = b1
    w2p = np.zeros((H_pad, H_pad), np.float32); w2p[:H, :H] = w2
    b2p = np.zeros((1, H_pad), np.float32);     b2p[:, :H] = b2
    whp = np.zeros((H_pad, A2), np.float32)     # fused head: [alpha | beta]
    whp[:H, :A] = wa
    whp[:H, A:] = wb
    bhp = np.zeros((1, A2), np.float32)
    bhp[:, :A] = ba
    bhp[:, A:] = bb

    return {
        "w1": jnp.asarray(w1p, matmul_dtype), "b1": jnp.asarray(b1p),
        "w2": jnp.asarray(w2p, matmul_dtype), "b2": jnp.asarray(b2p),
        "wh": jnp.asarray(whp, matmul_dtype), "bh": jnp.asarray(bhp),
        "state_dim": S, "hidden": H, "action_dim": A,
        "H_pad": H_pad, "A2": A2,
    }


# ----------------------------------------------------------------------------
# batch-tile selection
# ----------------------------------------------------------------------------

def _choose_batch_tile(B8, block_batch):
    """Pick a batch tile (multiple of 8) <= block_batch.

    Prefers (a) >= 2 grid steps when the batch allows it (v7x has 2 TCs and
    the batch axis is marked "parallel") and (b) a tile that exactly divides
    the 8-padded batch so no padded dead tile is produced.
    """
    cap = max(8, (min(block_batch, B8) // 8) * 8)
    if B8 >= 16:                                   # keep >= 2 steps for megacore
        cap = min(cap, max(8, (((B8 + 1) // 2) // 8) * 8))
    t = cap
    while t >= 8:                                  # largest mult-of-8 divisor <= cap
        if B8 % t == 0:
            break
        t -= 8
    if t >= 8 and B8 % t == 0 and t * 4 >= cap:    # exact divisor, no padded rows
        return t
    return cap                                     # else accept < one tile of padding


# ----------------------------------------------------------------------------
# forward wrapper
# ----------------------------------------------------------------------------

def actor_beta_forward(s, prep, block_batch=2048):
    """s: (B, state_dim).  prep: output of prepare_params.  Returns (alpha, beta)."""
    B, S = s.shape
    assert S == prep["state_dim"]
    H_pad, A2, A = prep["H_pad"], prep["A2"], prep["action_dim"]

    B8 = _round_up(B, 8)
    TB = _choose_batch_tile(B8, block_batch)
    B_pad = _round_up(B8, TB)
    grid = (B_pad // TB,)

    # Pad ONLY the batch dim (often a no-op); feature width stays at S.
    s_b = s.astype(jnp.float32)
    if B_pad != B:
        s_b = jnp.pad(s_b, ((0, B_pad - B), (0, 0)))

    args = (s_b, prep["w1"], prep["b1"], prep["w2"], prep["b2"],
            prep["wh"], prep["bh"])

    in_specs = [
        pl.BlockSpec((TB, S), lambda i: (i, 0)),        # state: batch-tiled, real width
        pl.BlockSpec((S, H_pad), lambda i: (0, 0)),     # weights/biases: VMEM-resident
        pl.BlockSpec((1, H_pad), lambda i: (0, 0)),
        pl.BlockSpec((H_pad, H_pad), lambda i: (0, 0)),
        pl.BlockSpec((1, H_pad), lambda i: (0, 0)),
        pl.BlockSpec((H_pad, A2), lambda i: (0, 0)),
        pl.BlockSpec((1, A2), lambda i: (0, 0)),
    ]
    # Unpadded output slab: block spans the full minor dim (2*A), DMA stays contiguous.
    out_specs = pl.BlockSpec((TB, A2), lambda i: (i, 0))

    flops = 2 * B_pad * (S * H_pad + H_pad * H_pad + H_pad * A2)
    transcendentals = B_pad * (2 * H_pad + 2 * A2)
    bytes_accessed = int(
        sum(int(np.prod(a.shape)) * a.dtype.itemsize for a in args) + B_pad * A2 * 4
    )

    out = pl.pallas_call(
        actor_beta_kernel,
        out_shape=jax.ShapeDtypeStruct((B_pad, A2), jnp.float32),
        grid=grid,
        in_specs=in_specs,
        out_specs=out_specs,
        compiler_params=pltpu.CompilerParams(
            dimension_semantics=("parallel",)),          # batch axis -> both TCs on v7x
        cost_estimate=pl.CostEstimate(
            flops=int(flops), transcendentals=int(transcendentals),
            bytes_accessed=bytes_accessed),
    )(*args)

    alpha = out[:B, :A]
    beta = out[:B, A:]
    return alpha, beta


def reference_forward(s, p):
    h = jnp.tanh(s @ p["w1"] + p["b1"])
    h = jnp.tanh(h @ p["w2"] + p["b2"])
    alpha = jax.nn.softplus(h @ p["wa"] + p["ba"]) + 1.0
    beta = jax.nn.softplus(h @ p["wb"] + p["bb"]) + 1.0
    return alpha, beta


if __name__ == "__main__":
    state_dim, hidden_width, action_dim, batch = 16, 32, 4, 8

    params = make_params(state_dim, hidden_width, action_dim, seed=0)
    key = jax.random.PRNGKey(0)
    s = jax.random.normal(key, (batch, state_dim), dtype=jnp.float32)

    ref_a, ref_b = reference_forward(s, params)

    # default path: bf16 matmul inputs, f32 accumulation / activations
    prep_bf16 = prepare_params(params)                    # matmul_dtype = bf16
    alpha, beta = actor_beta_forward(s, prep_bf16)
    jax.block_until_ready((alpha, beta))
    assert alpha.shape == (batch, action_dim) and beta.shape == (batch, action_dim)
    assert np.allclose(np.asarray(alpha), np.asarray(ref_a), rtol=2e-2, atol=2e-2)
    assert np.allclose(np.asarray(beta), np.asarray(ref_b), rtol=2e-2, atol=2e-2)
    assert np.all(np.asarray(alpha) > 1.0) and np.all(np.asarray(beta) > 1.0)

    # f32 path: matches the reference to float rounding
    prep_f32 = prepare_params(params, matmul_dtype=jnp.float32)
    a32, b32 = actor_beta_forward(s, prep_f32)
    jax.block_until_ready((a32, b32))
    assert np.allclose(np.asarray(a32), np.asarray(ref_a), rtol=1e-5, atol=1e-5)
    assert np.allclose(np.asarray(b32), np.asarray(ref_b), rtol=1e-5, atol=1e-5)

    print("KERNEL_OK")
</pallas_src>

<mosaic_0001>
module attributes {stable_mosaic.version = 11 : i64} {
  func.func @actor_beta_kernel(%arg0: i32, %arg1: memref<8x16xf32, #tpu.memory_space<vmem>>, %arg2: memref<16x128xbf16, #tpu.memory_space<vmem>>, %arg3: memref<1x128xf32, #tpu.memory_space<vmem>>, %arg4: memref<128x128xbf16, #tpu.memory_space<vmem>>, %arg5: memref<1x128xf32, #tpu.memory_space<vmem>>, %arg6: memref<128x8xbf16, #tpu.memory_space<vmem>>, %arg7: memref<1x8xf32, #tpu.memory_space<vmem>>, %arg8: memref<8x8xf32, #tpu.memory_space<vmem>>) attributes {dimension_semantics = [#tpu.dimension_semantics<parallel>], iteration_bounds = array<i64: 1>, scalar_prefetch = 0 : i64, scratch_operands = 0 : i64, tpu.core_type = #tpu.core_type<tc>, window_params = [{transform_indices = @transform_0, window_bounds = array<i64: 8, 16>}, {pipeline_mode = #tpu.pipeline_mode<synchronous>, transform_indices = @transform_1, window_bounds = array<i64: 16, 128>}, {pipeline_mode = #tpu.pipeline_mode<synchronous>, transform_indices = @transform_2, window_bounds = array<i64: 1, 128>}, {pipeline_mode = #tpu.pipeline_mode<synchronous>, transform_indices = @transform_3, window_bounds = array<i64: 128, 128>}, {pipeline_mode = #tpu.pipeline_mode<synchronous>, transform_indices = @transform_4, window_bounds = array<i64: 1, 128>}, {pipeline_mode = #tpu.pipeline_mode<synchronous>, transform_indices = @transform_5, window_bounds = array<i64: 128, 8>}, {pipeline_mode = #tpu.pipeline_mode<synchronous>, transform_indices = @transform_6, window_bounds = array<i64: 1, 8>}, {transform_indices = @transform_7, window_bounds = array<i64: 8, 8>}]} {
    %c0 = arith.constant 0 : index
    %c0_0 = arith.constant 0 : index
    %0 = vector.load %arg1[%c0, %c0_0] : memref<8x16xf32, #tpu.memory_space<vmem>>, vector<8x16xf32>
    %1 = arith.truncf %0 : vector<8x16xf32> to vector<8x16xbf16>
    %c0_1 = arith.constant 0 : index
    %c0_2 = arith.constant 0 : index
    %2 = vector.load %arg2[%c0_1, %c0_2] : memref<16x128xbf16, #tpu.memory_space<vmem>>, vector<16x128xbf16>
    %cst = arith.constant dense<0.000000e+00> : vector<8x128xf32>
    %3 = tpu.matmul %1, %2, %cst {dimension_numbers = #tpu.dot_dimension_numbers<[1], [0], [0], [1], [0, 0, 1, 1], [], []>} : vector<8x16xbf16>, vector<16x128xbf16>, vector<8x128xf32> -> vector<8x128xf32>
    %c0_3 = arith.constant 0 : index
    %c0_4 = arith.constant 0 : index
    %4 = vector.load %arg3[%c0_3, %c0_4] : memref<1x128xf32, #tpu.memory_space<vmem>>, vector<1x128xf32>
    %5 = vector.broadcast %4 : vector<1x128xf32> to vector<8x128xf32>
    %6 = arith.addf %3, %5 : vector<8x128xf32>
    %7 = math.tanh %6 : vector<8x128xf32>
    %8 = arith.truncf %7 : vector<8x128xf32> to vector<8x128xbf16>
    %c0_5 = arith.constant 0 : index
    %c0_6 = arith.constant 0 : index
    %9 = vector.load %arg4[%c0_5, %c0_6] : memref<128x128xbf16, #tpu.memory_space<vmem>>, vector<128x128xbf16>
    %cst_7 = arith.constant dense<0.000000e+00> : vector<8x128xf32>
    %10 = tpu.matmul %8, %9, %cst_7 {dimension_numbers = #tpu.dot_dimension_numbers<[1], [0], [0], [1], [0, 0, 1, 1], [], []>} : vector<8x128xbf16>, vector<128x128xbf16>, vector<8x128xf32> -> vector<8x128xf32>
    %c0_8 = arith.constant 0 : index
    %c0_9 = arith.constant 0 : index
    %11 = vector.load %arg5[%c0_8, %c0_9] : memref<1x128xf32, #tpu.memory_space<vmem>>, vector<1x128xf32>
    %12 = vector.broadcast %11 : vector<1x128xf32> to vector<8x128xf32>
    %13 = arith.addf %10, %12 : vector<8x128xf32>
    %14 = math.tanh %13 : vector<8x128xf32>
    %15 = arith.truncf %14 : vector<8x128xf32> to vector<8x128xbf16>
    %c0_10 = arith.constant 0 : index
    %c0_11 = arith.constant 0 : index
    %16 = vector.load %arg6[%c0_10, %c0_11] : memref<128x8xbf16, #tpu.memory_space<vmem>>, vector<128x8xbf16>
    %cst_12 = arith.constant dense<0.000000e+00> : vector<8x8xf32>
    %17 = tpu.matmul %15, %16, %cst_12 {dimension_numbers = #tpu.dot_dimension_numbers<[1], [0], [0], [1], [0, 0, 1, 1], [], []>} : vector<8x128xbf16>, vector<128x8xbf16>, vector<8x8xf32> -> vector<8x8xf32>
    %c0_13 = arith.constant 0 : index
    %c0_14 = arith.constant 0 : index
    %18 = vector.load %arg7[%c0_13, %c0_14] : memref<1x8xf32, #tpu.memory_space<vmem>>, vector<1x8xf32>
    %19 = vector.broadcast %18 : vector<1x8xf32> to vector<8x8xf32>
    %20 = arith.addf %17, %19 : vector<8x8xf32>
    %cst_15 = arith.constant 0.000000e+00 : f32
    %21 = vector.broadcast %cst_15 : f32 to vector<8x8xf32>
    %22 = arith.maximumf %20, %21 : vector<8x8xf32>
    %23 = math.absf %20 : vector<8x8xf32>
    %cst_16 = arith.constant 0.000000e+00 : f32
    %24 = vector.broadcast %cst_16 : f32 to vector<8x8xf32>
    %25 = arith.subf %24, %23 : vector<8x8xf32>
    %26 = math.exp %25 : vector<8x8xf32>
    %27 = math.log1p %26 : vector<8x8xf32>
    %28 = arith.addf %22, %27 : vector<8x8xf32>
    %cst_17 = arith.constant 1.000000e+00 : f32
    %29 = vector.broadcast %cst_17 : f32 to vector<8x8xf32>
    %30 = arith.addf %28, %29 : vector<8x8xf32>
    %c0_18 = arith.constant 0 : index
    %c0_19 = arith.constant 0 : index
    %31 = vector.load %arg8[%c0_18, %c0_19] : memref<8x8xf32, #tpu.memory_space<vmem>>, vector<8x8xf32>
    tpu.vector_store %arg8[%c0_18, %c0_19], %30 {strides = array<i32>} : memref<8x8xf32, #tpu.memory_space<vmem>>, vector<8x8xf32>,
    return
  }
  func.func @transform_0(%arg0: i32) -> (i32, i32) {
    %c0_i32 = arith.constant 0 : i32
    %c0_i32_0 = arith.constant 0 : i32
    return %arg0, %c0_i32 : i32, i32
  }
  func.func @transform_1(%arg0: i32) -> (i32, i32) {
    %c0_i32 = arith.constant 0 : i32
    %c0_i32_0 = arith.constant 0 : i32
    %c0_i32_1 = arith.constant 0 : i32
    return %c0_i32, %c0_i32_0 : i32, i32
  }
  func.func @transform_2(%arg0: i32) -> (i32, i32) {
    %c0_i32 = arith.constant 0 : i32
    %c0_i32_0 = arith.constant 0 : i32
    %c0_i32_1 = arith.constant 0 : i32
    return %c0_i32, %c0_i32_0 : i32, i32
  }
  func.func @transform_3(%arg0: i32) -> (i32, i32) {
    %c0_i32 = arith.constant 0 : i32
    %c0_i32_0 = arith.constant 0 : i32
    %c0_i32_1 = arith.constant 0 : i32
    return %c0_i32, %c0_i32_0 : i32, i32
  }
  func.func @transform_4(%arg0: i32) -> (i32, i32) {
    %c0_i32 = arith.constant 0 : i32
    %c0_i32_0 = arith.constant 0 : i32
    %c0_i32_1 = arith.constant 0 : i32
    return %c0_i32, %c0_i32_0 : i32, i32
  }
  func.func @transform_5(%arg0: i32) -> (i32, i32) {
    %c0_i32 = arith.constant 0 : i32
    %c0_i32_0 = arith.constant 0 : i32
    %c0_i32_1 = arith.constant 0 : i32
    return %c0_i32, %c0_i32_0 : i32, i32
  }
  func.func @transform_6(%arg0: i32) -> (i32, i32) {
    %c0_i32 = arith.constant 0 : i32
    %c0_i32_0 = arith.constant 0 : i32
    %c0_i32_1 = arith.constant 0 : i32
    return %c0_i32, %c0_i32_0 : i32, i32
  }
  func.func @transform_7(%arg0: i32) -> (i32, i32) {
    %c0_i32 = arith.constant 0 : i32
    %c0_i32_0 = arith.constant 0 : i32
    return %arg0, %c0_i32 : i32, i32
  }
}

</mosaic_0001>

<llo_original>
// kernel: tpu_custom_call.1
$region0: #{tpu_custom_call.1}
  #allocation0 [shape = 'u32[]', space=smem, size = 0x4, offset = 0x4, fixed_abs, tag = 'smem constant byte address 0x4 - core index']
  #allocation1 [shape = 'u32[144,128]{1,0:T(1,128)}', space=vmem, size = 0x12000, scoped, tag = 'internal scratch']
  %s0 = inlined_call_operand.vmem [shape: f32[8,16], index: 0, kind: input, shape index: {}]
  %s1 = inlined_call_operand.hbm [shape: bf16[16,128], index: 1, kind: input, shape index: {}]
  %s2 = inlined_call_operand.vmem [shape: f32[1,128], index: 2, kind: input, shape index: {}]
  %s3 = inlined_call_operand.vmem [shape: bf16[128,128], index: 3, kind: input, shape index: {}]
  %s4 = inlined_call_operand.vmem [shape: f32[1,128], index: 4, kind: input, shape index: {}]
  %s5 = inlined_call_operand.vmem [shape: bf16[128,8], index: 5, kind: input, shape index: {}]
  %s6 = inlined_call_operand.vmem [shape: f32[1,8], index: 6, kind: input, shape index: {}]
  %s7 = inlined_call_operand.hbm [shape: f32[8,8], index: 7, kind: output, shape index: {}]
  %s8 = sld [smem:[#allocation0]]
  $region42: #{tpu_custom_call.1} parent=0
    _
  %s10 = ssub.s32 1, %s8
  %s11 = scalar_select 0, %s10, %s8
  $region1: #{tpu_custom_call.1} parent=0
    #allocation2 [shape = 'u8[4096]{0}', space=vmem, size = 0x1000, scoped, tag = 'input window, operand 1, single buffered']
    #allocation3 [shape = 's32[1]{0}', space=sflag, size = 0x4, scoped, tag = 'scoped memory for tpu_custom_call.1']
    #allocation4 [shape = 's32[1]{0}', space=sflag, size = 0x4, scoped, tag = 'scoped memory for tpu_custom_call.1']
    #allocation5 [shape = 'u8[4096]{0}', space=vmem, size = 0x1000, scoped, tag = 'output window, operand 0, single buffered']
    %12 = vsyncpa [#allocation3], 0
    %13 = vsyncpa [#allocation4], 0
    // Predicated region
    $region2: #{tpu_custom_call.1} parent=1 // pred_check
      _
    $region3: #{tpu_custom_call.1} parent=1 // pred_check_branch
      %15 = sbr.rel (0) target = $region5
    $region4: #{tpu_custom_call.1} parent=1 // pred_region
      _
    $region5: #{tpu_custom_call.1} parent=1 // pred_fallthru
      _
    // Predicated region
    $region6: #{tpu_custom_call.1} parent=1 // pred_check
      _
    $region7: #{tpu_custom_call.1} parent=1 // pred_check_branch
      %17 = sbr.rel (0) target = $region9
    $region8: #{tpu_custom_call.1} parent=1 // pred_region
      %s19 = ssub.s32 128, 128
      %20 = vsyncadd [#allocation3], %s19
      %s21 = sshll.u32 [#allocation2], 4
      %s22 = int_to_ptr.vmem [resolvable:$true] %s21
      %27 = dma.hbm_to_vmem [thread:$0]  %s1, 128, %s22, [#allocation3], 64, 64, 4
    $region9: #{tpu_custom_call.1} parent=1 // pred_fallthru
      _
    // Predicated region
    $region10: #{tpu_custom_call.1} parent=1 // pred_check
      _
    $region11: #{tpu_custom_call.1} parent=1 // pred_check_branch
      %29 = sbr.rel (0) target = $region13
    $region12: #{tpu_custom_call.1} parent=1 // pred_region
      _
    $region13: #{tpu_custom_call.1} parent=1 // pred_fallthru
      _
    // Predicated region
    $region14: #{tpu_custom_call.1} parent=1 // pred_check
      _
    $region15: #{tpu_custom_call.1} parent=1 // pred_check_branch
      %31 = sbr.rel (0) target = $region17
    $region16: #{tpu_custom_call.1} parent=1 // pred_region
      _
    $region17: #{tpu_custom_call.1} parent=1 // pred_fallthru
      _
    // Predicated region
    $region18: #{tpu_custom_call.1} parent=1 // pred_check
      _
    $region19: #{tpu_custom_call.1} parent=1 // pred_check_branch
      %33 = sbr.rel (0) target = $region21
    $region20: #{tpu_custom_call.1} parent=1 // pred_region
      _
    $region21: #{tpu_custom_call.1} parent=1 // pred_fallthru
      _
    // Predicated region
    $region22: #{tpu_custom_call.1} parent=1 // pred_check
      _
    $region23: #{tpu_custom_call.1} parent=1 // pred_check_branch
      %35 = sbr.rel (0) target = $region25
    $region24: #{tpu_custom_call.1} parent=1 // pred_region
      _
    $region25: #{tpu_custom_call.1} parent=1 // pred_fallthru
      _
    // Predicated region
    $region26: #{tpu_custom_call.1} parent=1 // pred_check
      _
    $region27: #{tpu_custom_call.1} parent=1 // pred_check_branch
      %37 = sbr.rel (0) target = $region29
    $region28: #{tpu_custom_call.1} parent=1 // pred_region
      _
    $region29: #{tpu_custom_call.1} parent=1 // pred_fallthru
      _
    // Predicated region
    $region30: #{tpu_custom_call.1} parent=1 // pred_check
      _
    $region31: #{tpu_custom_call.1} parent=1 // pred_check_branch
      %39 = sbr.rel (0) target = $region33
    $region32: #{tpu_custom_call.1} parent=1 // pred_region
      %40 = dma.done [#allocation3], 128
    $region33: #{tpu_custom_call.1} parent=1 // pred_fallthru
      _
    %v42 = vld [vmem:[%s0] sm:$0xff]
    %v43 = vpack.c.bf16 %v42, %v42
    %v44 = vld [vmem:[#allocation2] sm:$0xf]
    %v45 = vld [vmem:[#allocation2 + $0x4] sm:$0xf]
    %v46 = vld [vmem:[%s2] sm:$0x1]
    %v48 = vlaneseq
    %v49 = vshrl.u32 %v48, 7
    %v50 = vsub.s32 0, %v49
    %v51 = vrot.slane %v46, %v50
    %v55 = vunpack.c.l.b16 %v44
    %v56 = vunpack.c.l.b16 %v45
    %v57 = vpack.c.b16 %v56, %v55
    %vm59 = vcmask 130048
    %v61 = vsel %vm59, %v43, 0
    %63 = vmatprep.subr.bf16.mxu0 0
    %64 = vmatpush1.bf16.msra.mxu0 %v57
    %65 = vmatprep.subr.bf16.mxu0 0
    %66 = vmatpush1.bf16.msra.mxu0 0
    %67 = vmatprep.subr.bf16.mxu0 0
    %68 = vmatpush1.bf16.msra.mxu0 0
    %69 = vmatprep.subr.bf16.mxu0 0
    %70 = vmatpush1.bf16.msra.mxu0 0
    %71 = vmatprep.subr.bf16.mxu0 0
    %72 = vmatpush1.bf16.msra.mxu0 0
    %73 = vmatprep.subr.bf16.mxu0 0
    %74 = vmatpush1.bf16.msra.mxu0 0
    %75 = vmatprep.subr.bf16.mxu0 0
    %76 = vmatpush1.bf16.msra.mxu0 0
    %77 = vmatprep.subr.bf16.mxu0 0
    %78 = vmatpush1.bf16.msra.mxu0 0
    %79 = vmatprep.subr.bf16.mxu0 0
    %80 = vmatpush1.bf16.msra.mxu0 0
    %81 = vmatprep.subr.bf16.mxu0 0
    %82 = vmatpush1.bf16.msra.mxu0 0
    %83 = vmatprep.subr.bf16.mxu0 0
    %84 = vmatpush1.bf16.msra.mxu0 0
    %85 = vmatprep.subr.bf16.mxu0 0
    %86 = vmatpush1.bf16.msra.mxu0 0
    %87 = vmatprep.subr.bf16.mxu0 0
    %88 = vmatpush1.bf16.msra.mxu0 0
    %89 = vmatprep.subr.bf16.mxu0 0
    %90 = vmatpush1.bf16.msra.mxu0 0
    %91 = vmatprep.subr.bf16.mxu0 0
    %92 = vmatpush1.bf16.msra.mxu0 0
    %93 = vmatprep.subr.bf16.mxu0 0
    %94 = vmatpush1.bf16.msra.mxu0 0
    %95 = vmatprep.mubr.bf16.mxu0 0
    %96 = vmatmul.mubr.bf16.gmra.mrb[0].mxu0 %v61
    %v97 = vpop.f32.mrb[0].mxu0
    %v98 = vadd.f32 %v51, %v97
    %v99 = vpop.f32.mrb[0].mxu0
    %v100 = vpop.f32.mrb[0].mxu0
    %v101 = vpop.f32.mrb[0].mxu0
    %102 = vdwg.mxu0
    %v103 = vtanh.pop %v98
    %v104 = vpack.c.bf16 %v103, %v103
    %v105 = vld [vmem:[%s3] sm:$0xf]
    %v106 = vld [vmem:[%s3 + $0x4] sm:$0xf]
    %v107 = vld [vmem:[%s3 + $0x8] sm:$0xf]
    %v108 = vld [vmem:[%s3 + $0xc] sm:$0xf]
    %v109 = vld [vmem:[%s3 + $0x10] sm:$0xf]
    %v110 = vld [vmem:[%s3 + $0x14] sm:$0xf]
    %v111 = vld [vmem:[%s3 + $0x18] sm:$0xf]
    %v112 = vld [vmem:[%s3 + $0x1c] sm:$0xf]
    %v113 = vld [vmem:[%s3 + $0x20] sm:$0xf]
    %v114 = vld [vmem:[%s3 + $0x24] sm:$0xf]
    %v115 = vld [vmem:[%s3 + $0x28] sm:$0xf]
    %v116 = vld [vmem:[%s3 + $0x2c] sm:$0xf]
    %v117 = vld [vmem:[%s3 + $0x30] sm:$0xf]
    %v118 = vld [vmem:[%s3 + $0x34] sm:$0xf]
    %v119 = vld [vmem:[%s3 + $0x38] sm:$0xf]
    %v120 = vld [vmem:[%s3 + $0x3c] sm:$0xf]
    %v121 = vld [vmem:[%s4] sm:$0x1]
    %v123 = vlaneseq
    %v124 = vshrl.u32 %v123, 7
    %v125 = vsub.s32 0, %v124
    %v126 = vrot.slane %v121, %v125
    %v144 = vunpack.c.l.b16 %v105
    %v145 = vunpack.c.l.b16 %v106
    %v146 = vunpack.c.l.b16 %v107
    %v147 = vunpack.c.l.b16 %v108
    %v148 = vunpack.c.l.b16 %v109
    %v149 = vunpack.c.l.b16 %v110
    %v150 = vunpack.c.l.b16 %v111
    %v151 = vunpack.c.l.b16 %v112
    %v152 = vunpack.c.l.b16 %v113
    %v153 = vunpack.c.l.b16 %v114
    %v154 = vunpack.c.l.b16 %v115
    %v155 = vunpack.c.l.b16 %v116
    %v156 = vunpack.c.l.b16 %v117
    %v157 = vunpack.c.l.b16 %v118
    %v158 = vunpack.c.l.b16 %v119
    %v159 = vunpack.c.l.b16 %v120
    %v160 = vpack.c.b16 %v145, %v144
    %v161 = vpack.c.b16 %v147, %v146
    %v162 = vpack.c.b16 %v149, %v148
    %v163 = vpack.c.b16 %v151, %v150
    %v164 = vpack.c.b16 %v153, %v152
    %v165 = vpack.c.b16 %v155, %v154
    %v166 = vpack.c.b16 %v157, %v156
    %v167 = vpack.c.b16 %v159, %v158
    %176 = vmatprep.subr.bf16.mxu0 0
    %177 = vmatpush1.bf16.msra.mxu0 %v160
    %178 = vmatprep.subr.bf16.mxu0 0
    %179 = vmatpush1.bf16.msra.mxu0 %v161
    %180 = vmatprep.subr.bf16.mxu0 0
    %181 = vmatpush1.bf16.msra.mxu0 %v162
    %182 = vmatprep.subr.bf16.mxu0 0
    %183 = vmatpush1.bf16.msra.mxu0 %v163
    %184 = vmatprep.subr.bf16.mxu0 0
    %185 = vmatpush1.bf16.msra.mxu0 %v164
    %186 = vmatprep.subr.bf16.mxu0 0
    %187 = vmatpush1.bf16.msra.mxu0 %v165
    %188 = vmatprep.subr.bf16.mxu0 0
    %189 = vmatpush1.bf16.msra.mxu0 %v166
    %190 = vmatprep.subr.bf16.mxu0 0
    %191 = vmatpush1.bf16.msra.mxu0 %v167
    %192 = vmatprep.subr.bf16.mxu0 0
    %193 = vmatpush1.bf16.msra.mxu0 0
    %194 = vmatprep.subr.bf16.mxu0 0
    %195 = vmatpush1.bf16.msra.mxu0 0
    %196 = vmatprep.subr.bf16.mxu0 0
    %197 = vmatpush1.bf16.msra.mxu0 0
    %198 = vmatprep.subr.bf16.mxu0 0
    %199 = vmatpush1.bf16.msra.mxu0 0
    %200 = vmatprep.subr.bf16.mxu0 0
    %201 = vmatpush1.bf16.msra.mxu0 0
    %202 = vmatprep.subr.bf16.mxu0 0
    %203 = vmatpush1.bf16.msra.mxu0 0
    %204 = vmatprep.subr.bf16.mxu0 0
    %205 = vmatpush1.bf16.msra.mxu0 0
    %206 = vmatprep.subr.bf16.mxu0 0
    %207 = vmatpush1.bf16.msra.mxu0 0
    %208 = vmatprep.mubr.bf16.mxu0 0
    %209 = vmatmul.mubr.bf16.gmra.mrb[0].mxu0 %v104
    %v210 = vpop.f32.mrb[0].mxu0
    %v211 = vadd.f32 %v126, %v210
    %v212 = vpop.f32.mrb[0].mxu0
    %v213 = vpop.f32.mrb[0].mxu0
    %v214 = vpop.f32.mrb[0].mxu0
    %215 = vdwg.mxu0
    %v216 = vtanh.pop %v211
    %v217 = vpack.c.bf16 %v216, %v216
    %v218 = vld [vmem:[%s5] sm:$0xf]
    %v219 = vld [vmem:[%s5 + $0x4] sm:$0xf]
    %v220 = vld [vmem:[%s5 + $0x8] sm:$0xf]
    %v221 = vld [vmem:[%s5 + $0xc] sm:$0xf]
    %v222 = vld [vmem:[%s5 + $0x10] sm:$0xf]
    %v223 = vld [vmem:[%s5 + $0x14] sm:$0xf]
    %v224 = vld [vmem:[%s5 + $0x18] sm:$0xf]
    %v225 = vld [vmem:[%s5 + $0x1c] sm:$0xf]
    %v226 = vld [vmem:[%s5 + $0x20] sm:$0xf]
    %v227 = vld [vmem:[%s5 + $0x24] sm:$0xf]
    %v228 = vld [vmem:[%s5 + $0x28] sm:$0xf]
    %v229 = vld [vmem:[%s5 + $0x2c] sm:$0xf]
    %v230 = vld [vmem:[%s5 + $0x30] sm:$0xf]
    %v231 = vld [vmem:[%s5 + $0x34] sm:$0xf]
    %v232 = vld [vmem:[%s5 + $0x38] sm:$0xf]
    %v233 = vld [vmem:[%s5 + $0x3c] sm:$0xf]
    %v234 = vld [vmem:[%s6] sm:$0x1]
    %v236 = vlaneseq
    %v237 = vshrl.u32 %v236, 7
    %v238 = vsub.s32 0, %v237
    %v239 = vrot.slane %v234, %v238
    %v257 = vunpack.c.l.b16 %v218
    %v258 = vunpack.c.l.b16 %v219
    %v259 = vunpack.c.l.b16 %v220
    %v260 = vunpack.c.l.b16 %v221
    %v261 = vunpack.c.l.b16 %v222
    %v262 = vunpack.c.l.b16 %v223
    %v263 = vunpack.c.l.b16 %v224
    %v264 = vunpack.c.l.b16 %v225
    %v265 = vunpack.c.l.b16 %v226
    %v266 = vunpack.c.l.b16 %v227
    %v267 = vunpack.c.l.b16 %v228
    %v268 = vunpack.c.l.b16 %v229
    %v269 = vunpack.c.l.b16 %v230
    %v270 = vunpack.c.l.b16 %v231
    %v271 = vunpack.c.l.b16 %v232
    %v272 = vunpack.c.l.b16 %v233
    %v273 = vpack.c.b16 %v258, %v257
    %v274 = vpack.c.b16 %v260, %v259
    %v275 = vpack.c.b16 %v262, %v261
    %v276 = vpack.c.b16 %v264, %v263
    %v277 = vpack.c.b16 %v266, %v265
    %v278 = vpack.c.b16 %v268, %v267
    %v279 = vpack.c.b16 %v270, %v269
    %v280 = vpack.c.b16 %v272, %v271
    %289 = vmatprep.subr.bf16.mxu0 0
    %290 = vmatpush1.bf16.msra.mxu0 %v273
    %291 = vmatprep.subr.bf16.mxu0 0
    %292 = vmatpush1.bf16.msra.mxu0 %v274
    %293 = vmatprep.subr.bf16.mxu0 0
    %294 = vmatpush1.bf16.msra.mxu0 %v275
    %295 = vmatprep.subr.bf16.mxu0 0
    %296 = vmatpush1.bf16.msra.mxu0 %v276
    %297 = vmatprep.subr.bf16.mxu0 0
    %298 = vmatpush1.bf16.msra.mxu0 %v277
    %299 = vmatprep.subr.bf16.mxu0 0
    %300 = vmatpush1.bf16.msra.mxu0 %v278
    %301 = vmatprep.subr.bf16.mxu0 0
    %302 = vmatpush1.bf16.msra.mxu0 %v279
    %303 = vmatprep.subr.bf16.mxu0 0
    %304 = vmatpush1.bf16.msra.mxu0 %v280
    %305 = vmatprep.subr.bf16.mxu0 0
    %306 = vmatpush1.bf16.msra.mxu0 0
    %307 = vmatprep.subr.bf16.mxu0 0
    %308 = vmatpush1.bf16.msra.mxu0 0
    %309 = vmatprep.subr.bf16.mxu0 0
    %310 = vmatpush1.bf16.msra.mxu0 0
    %311 = vmatprep.subr.bf16.mxu0 0
    %312 = vmatpush1.bf16.msra.mxu0 0
    %313 = vmatprep.subr.bf16.mxu0 0
    %314 = vmatpush1.bf16.msra.mxu0 0
    %315 = vmatprep.subr.bf16.mxu0 0
    %316 = vmatpush1.bf16.msra.mxu0 0
    %317 = vmatprep.subr.bf16.mxu0 0
    %318 = vmatpush1.bf16.msra.mxu0 0
    %319 = vmatprep.subr.bf16.mxu0 0
    %320 = vmatpush1.bf16.msra.mxu0 0
    %321 = vmatprep.mubr.bf16.mxu0 0
    %322 = vmatmul.mubr.bf16.gmra.mrb[0].mxu0 %v217
    %v323 = vpop.f32.mrb[0].mxu0
    %v324 = vadd.f32 %v239, %v323
    %v325 = vpop.f32.mrb[0].mxu0
    %v326 = vpop.f32.mrb[0].mxu0
    %v327 = vpop.f32.mrb[0].mxu0
    %328 = vdwg.mxu0
    %v329 = vmax.f32 %v324, 0.0
    %v330 = vand.u32 2147483647, %v324
    %v331 = vsub.f32 0.0, %v330
    %v332 = vmul.f32 %v331, 1.442695
    %v333 = vpow.pop %v332
    %v334 = vadd.f32 %v333, 1.0
    %v335 = vlog2.pop %v334
    %v336 = vmul.f32 %v335, 0.6931472
    %v337 = vmul.f32 -0.5, %v333
    %v338 = vadd.f32 %v337, 1.0
    %v339 = vmul.f32 %v338, %v333
    %v340 = vand.u32 2147483647, %v333
    %vm341 = vcmp.lt.f32.partialorder %v340, 0.0004427343
    %v342 = vsel %vm341, %v339, %v336
    %v343 = vadd.f32 %v329, %v342
    %v344 = vadd.f32 %v343, 1.0
    %vm345 = vcmask 64512
    %346 = vst.msk [vmem:[#allocation5] sm:$0xff] %vm345, %v344
    // Predicated region
    $region34: #{tpu_custom_call.1} parent=1 // pred_check
      _
    $region35: #{tpu_custom_call.1} parent=1 // pred_check_branch
      %348 = sbr.rel (0) target = $region37
    $region36: #{tpu_custom_call.1} parent=1 // pred_region
      %s350 = ssub.s32 128, 128
      %351 = vsyncadd [#allocation4], %s350
      %s353 = sshll.u32 [#allocation5], 4
      %s354 = int_to_ptr.vmem [resolvable:$true] %s353
      %356 = dma.vmem_to_hbm [thread:$0]  %s354, 128, %s7, [#allocation4]
    $region37: #{tpu_custom_call.1} parent=1 // pred_fallthru
      _
    // Predicated region
    $region38: #{tpu_custom_call.1} parent=1 // pred_check
      _
    $region39: #{tpu_custom_call.1} parent=1 // pred_check_branch
      %358 = sbr.rel (0) target = $region41
    $region40: #{tpu_custom_call.1} parent=1 // pred_region
      %359 = dma.done [#allocation4], 128
    $region41: #{tpu_custom_call.1} parent=1 // pred_fallthru
      _
    %360 = vsyncpa [#allocation3], 1
    %361 = vsyncpa [#allocation4], 1

</llo_original>
